<compile_context>
chip_gen: v5e
topology: v5e:2x2
jax: 0.10.0
libtpu: 0.0.40
codegen_flags: <defaults>
</compile_context>

<pallas_src>
import jax
import jax.numpy as jnp
from jax.experimental import pallas as pl
from jax.experimental.pallas import tpu as pltpu

BN_EPS = 1e-5


def _tap_masks(H, W):
    """(9, H*W) f32 validity masks for the 3x3 taps (zero outside the image)."""
    hh = jnp.arange(H, dtype=jnp.int32).reshape(H, 1)
    ww = jnp.arange(W, dtype=jnp.int32).reshape(1, W)
    masks = []
    for kh in range(3):
        for kw in range(3):
            dh, dw = kh - 1, kw - 1
            m = ((hh + dh >= 0) & (hh + dh < H) &
                 (ww + dw >= 0) & (ww + dw < W))
            masks.append(m.astype(jnp.float32).reshape(H * W))
    return jnp.stack(masks, axis=0)  # (9, H*W)


def _make_fused_kernel(N, Cin, Cout, H, W):
    HW = H * W

    def kernel(x_ref, w_ref, gamma_ref, beta_ref, mask_ref, o_ref):
        # x_ref:     (N, Cin, H*W)   spatial on lanes (lane-dense)
        # w_ref:     (Cout, 9*Cin)   columns ordered (kh, kw, cin)
        # gamma_ref, beta_ref: (Cout, 1)
        # mask_ref:  (9, H*W)        per-tap border masks
        # o_ref:     (N, Cout, H*W)
        w_mat = w_ref[...]
        masks = mask_ref[...]                                 # (9, HW)

        # Build the im2col patch for ALL batch elements as one value:
        # rows = (tap, cin), cols = (n, hw)  ->  (9*Cin, N*HW).
        cols = []
        for n in range(N):
            x_n = x_ref[n]                                    # (Cin, HW)
            taps = []
            t = 0
            for kh in range(3):
                for kw in range(3):
                    dh, dw = kh - 1, kw - 1
                    s = dh * W + dw                           # flattened tap offset
                    if s == 0:
                        # center tap: no roll, mask is all-ones -> skip multiply
                        shifted = x_n
                    else:
                        # out[idx] = x[idx + s]; wrapped lanes are OOB -> masked to 0
                        shifted = pltpu.roll(x_n, shift=(-s) % HW, axis=1)
                        shifted = shifted * masks[t:t + 1, :]
                    taps.append(shifted)
                    t += 1
            cols.append(jnp.concatenate(taps, axis=0))        # (9*Cin, HW)
        patch = jnp.concatenate(cols, axis=1)                 # (9*Cin, N*HW)

        # Single K = 9*Cin matmul on the MXU (f32 accumulate) for the whole batch.
        # Conv bias omitted: it cancels exactly through training-mode BN.
        conv = jnp.dot(w_mat, patch,
                       preferred_element_type=jnp.float32)    # (Cout, N*HW)

        # BatchNorm2d training-mode statistics over (N, H, W) per channel,
        # single pass: sum and sum-of-squares along the lane axis (f32).
        inv_cnt = 1.0 / float(N * HW)
        s1 = jnp.sum(conv, axis=1, keepdims=True)             # (Cout, 1)
        s2 = jnp.sum(conv * conv, axis=1, keepdims=True)      # (Cout, 1)
        mean = s1 * inv_cnt
        var = jnp.maximum(s2 * inv_cnt - mean * mean, 0.0)    # biased variance

        inv_std = jax.lax.rsqrt(var + BN_EPS)
        scale = gamma_ref[...] * inv_std                      # (Cout, 1)
        shift = beta_ref[...] - mean * scale                  # (Cout, 1)

        # Normalize + ReLU once on the full slab (single broadcast), then
        # lane-dense stores; per-n column slices start at multiples of HW.
        y = jnp.maximum(conv * scale + shift, 0.0)            # (Cout, N*HW)
        for n in range(N):
            o_ref[n] = y[:, n * HW:(n + 1) * HW].astype(o_ref.dtype)

    return kernel


def single_conv_relu_batch_forward(x_nchw, w_oihw, b, gamma, beta):
    """x_nchw: (N, Cin, H, W) f32 -> (N, Cout, H, W) f32 (conv3x3 + BN + ReLU)."""
    N, Cin, H, W = x_nchw.shape
    Cout = w_oihw.shape[0]
    HW = H * W

    # Free / tiny layout plumbing (no HBM round trip of the activation tensor):
    x_flat = x_nchw.reshape(N, Cin, HW)                        # contiguous reshape
    w_mat = jnp.transpose(w_oihw, (0, 2, 3, 1)).reshape(Cout, 9 * Cin)
    g2 = gamma.reshape(Cout, 1)
    be2 = beta.reshape(Cout, 1)
    masks = _tap_masks(H, W)                                   # (9, HW)
    del b  # per-channel conv bias cancels exactly through training-mode BatchNorm

    kernel = _make_fused_kernel(N, Cin, Cout, H, W)

    out_flat = pl.pallas_call(
        kernel,
        out_shape=jax.ShapeDtypeStruct((N, Cout, HW), jnp.float32),
        grid_spec=pltpu.PrefetchScalarGridSpec(
            num_scalar_prefetch=0,
            grid=(1,),
            in_specs=[
                pl.BlockSpec((N, Cin, HW), lambda i: (0, 0, 0)),
                pl.BlockSpec((Cout, 9 * Cin), lambda i: (0, 0)),
                pl.BlockSpec((Cout, 1), lambda i: (0, 0)),
                pl.BlockSpec((Cout, 1), lambda i: (0, 0)),
                pl.BlockSpec((9, HW), lambda i: (0, 0)),
            ],
            out_specs=pl.BlockSpec((N, Cout, HW), lambda i: (0, 0, 0)),
        ),
        compiler_params=pltpu.CompilerParams(
            dimension_semantics=("arbitrary",)),
    )(x_flat, w_mat, g2, be2, masks)

    # (N, Cout, H*W) -> (N, Cout, H, W): contiguous reshape, no data movement.
    return out_flat.reshape(N, Cout, H, W)


def _reference(x, w, b, gamma, beta):
    """Pure-JAX reference of the PyTorch forward (training-mode BN)."""
    y = jax.lax.conv_general_dilated(
        x, w, window_strides=(1, 1), padding=((1, 1), (1, 1)),
        dimension_numbers=("NCHW", "OIHW", "NCHW"),
        precision=jax.lax.Precision.HIGHEST)
    y = y + b.reshape(1, -1, 1, 1)
    mean = jnp.mean(y, axis=(0, 2, 3), keepdims=True)
    var = jnp.mean((y - mean) ** 2, axis=(0, 2, 3), keepdims=True)
    yn = (y - mean) * jax.lax.rsqrt(var + BN_EPS)
    out = yn * gamma.reshape(1, -1, 1, 1) + beta.reshape(1, -1, 1, 1)
    return jnp.maximum(out, 0.0)


if __name__ == "__main__":
    # Small shapes consistent with the module: N=2, in_ch=4, out_ch=8, H=W=16.
    N, Cin, Cout, H, W = 2, 4, 8, 16, 16

    key = jax.random.PRNGKey(0)
    kx, kw, kb = jax.random.split(key, 3)

    x = jax.random.normal(kx, (N, Cin, H, W), dtype=jnp.float32)

    # Deterministic parameter init (shapes match nn.Conv2d + nn.BatchNorm2d).
    fan_in = Cin * 3 * 3
    bound = 1.0 / (fan_in ** 0.5)
    w = jax.random.uniform(kw, (Cout, Cin, 3, 3), jnp.float32, -bound, bound)
    b = jax.random.uniform(kb, (Cout,), jnp.float32, -bound, bound)
    gamma = jnp.ones((Cout,), jnp.float32)   # BatchNorm2d weight init
    beta = jnp.zeros((Cout,), jnp.float32)   # BatchNorm2d bias init

    fwd = jax.jit(single_conv_relu_batch_forward)
    out = fwd(x, w, b, gamma, beta)
    jax.block_until_ready(out)
    assert out.shape == (N, Cout, H, W)

    ref = _reference(x, w, b, gamma, beta)
    max_err = float(jnp.max(jnp.abs(out - ref)))
    assert max_err < 1e-3, f"mismatch vs reference: max abs err = {max_err}"

    print("KERNEL_OK")
</pallas_src>

<mosaic_0001>
module attributes {stable_mosaic.version = 11 : i64} {
  func.func @kernel(%arg0: i32, %arg1: memref<2x4x256xf32, #tpu.memory_space<vmem>>, %arg2: memref<8x36xf32, #tpu.memory_space<vmem>>, %arg3: memref<8x1xf32, #tpu.memory_space<vmem>>, %arg4: memref<8x1xf32, #tpu.memory_space<vmem>>, %arg5: memref<9x256xf32, #tpu.memory_space<vmem>>, %arg6: memref<2x8x256xf32, #tpu.memory_space<vmem>>) attributes {dimension_semantics = [#tpu.dimension_semantics<arbitrary>], iteration_bounds = array<i64: 1>, scalar_prefetch = 0 : i64, scratch_operands = 0 : i64, tpu.core_type = #tpu.core_type<tc>, window_params = [{pipeline_mode = #tpu.pipeline_mode<synchronous>, transform_indices = @transform_0, window_bounds = array<i64: 2, 4, 256>}, {pipeline_mode = #tpu.pipeline_mode<synchronous>, transform_indices = @transform_1, window_bounds = array<i64: 8, 36>}, {pipeline_mode = #tpu.pipeline_mode<synchronous>, transform_indices = @transform_2, window_bounds = array<i64: 8, 1>}, {pipeline_mode = #tpu.pipeline_mode<synchronous>, transform_indices = @transform_3, window_bounds = array<i64: 8, 1>}, {pipeline_mode = #tpu.pipeline_mode<synchronous>, transform_indices = @transform_4, window_bounds = array<i64: 9, 256>}, {pipeline_mode = #tpu.pipeline_mode<synchronous>, transform_indices = @transform_5, window_bounds = array<i64: 2, 8, 256>}]} {
    %c0 = arith.constant 0 : index
    %c0_0 = arith.constant 0 : index
    %0 = vector.load %arg2[%c0, %c0_0] : memref<8x36xf32, #tpu.memory_space<vmem>>, vector<8x36xf32>
    %c0_1 = arith.constant 0 : index
    %c0_2 = arith.constant 0 : index
    %1 = vector.load %arg5[%c0_1, %c0_2] : memref<9x256xf32, #tpu.memory_space<vmem>>, vector<9x256xf32>
    %c0_3 = arith.constant 0 : index
    %c0_4 = arith.constant 0 : index
    %c0_5 = arith.constant 0 : index
    %2 = vector.load %arg1[%c0_3, %c0_4, %c0_5] : memref<2x4x256xf32, #tpu.memory_space<vmem>>, vector<1x4x256xf32>
    %3 = vector.shape_cast %2 : vector<1x4x256xf32> to vector<4x256xf32>
    %c17_i32 = arith.constant 17 : i32
    %4 = tpu.dynamic_rotate %3 by %c17_i32 dim 1 : vector<4x256xf32>, i32 -> vector<4x256xf32>
    %5 = vector.extract_strided_slice %1 {offsets = [0, 0], sizes = [1, 256], strides = [1, 1]} : vector<9x256xf32> to vector<1x256xf32>
    %6 = vector.broadcast %5 : vector<1x256xf32> to vector<4x256xf32>
    %7 = arith.mulf %4, %6 : vector<4x256xf32>
    %c16_i32 = arith.constant 16 : i32
    %8 = tpu.dynamic_rotate %3 by %c16_i32 dim 1 : vector<4x256xf32>, i32 -> vector<4x256xf32>
    %9 = vector.extract_strided_slice %1 {offsets = [1, 0], sizes = [1, 256], strides = [1, 1]} : vector<9x256xf32> to vector<1x256xf32>
    %10 = vector.broadcast %9 : vector<1x256xf32> to vector<4x256xf32>
    %11 = arith.mulf %8, %10 : vector<4x256xf32>
    %c15_i32 = arith.constant 15 : i32
    %12 = tpu.dynamic_rotate %3 by %c15_i32 dim 1 : vector<4x256xf32>, i32 -> vector<4x256xf32>
    %13 = vector.extract_strided_slice %1 {offsets = [2, 0], sizes = [1, 256], strides = [1, 1]} : vector<9x256xf32> to vector<1x256xf32>
    %14 = vector.broadcast %13 : vector<1x256xf32> to vector<4x256xf32>
    %15 = arith.mulf %12, %14 : vector<4x256xf32>
    %c1_i32 = arith.constant 1 : i32
    %16 = tpu.dynamic_rotate %3 by %c1_i32 dim 1 : vector<4x256xf32>, i32 -> vector<4x256xf32>
    %17 = vector.extract_strided_slice %1 {offsets = [3, 0], sizes = [1, 256], strides = [1, 1]} : vector<9x256xf32> to vector<1x256xf32>
    %18 = vector.broadcast %17 : vector<1x256xf32> to vector<4x256xf32>
    %19 = arith.mulf %16, %18 : vector<4x256xf32>
    %c255_i32 = arith.constant 255 : i32
    %20 = tpu.dynamic_rotate %3 by %c255_i32 dim 1 : vector<4x256xf32>, i32 -> vector<4x256xf32>
    %21 = vector.extract_strided_slice %1 {offsets = [5, 0], sizes = [1, 256], strides = [1, 1]} : vector<9x256xf32> to vector<1x256xf32>
    %22 = vector.broadcast %21 : vector<1x256xf32> to vector<4x256xf32>
    %23 = arith.mulf %20, %22 : vector<4x256xf32>
    %c241_i32 = arith.constant 241 : i32
    %24 = tpu.dynamic_rotate %3 by %c241_i32 dim 1 : vector<4x256xf32>, i32 -> vector<4x256xf32>
    %25 = vector.extract_strided_slice %1 {offsets = [6, 0], sizes = [1, 256], strides = [1, 1]} : vector<9x256xf32> to vector<1x256xf32>
    %26 = vector.broadcast %25 : vector<1x256xf32> to vector<4x256xf32>
    %27 = arith.mulf %24, %26 : vector<4x256xf32>
    %c240_i32 = arith.constant 240 : i32
    %28 = tpu.dynamic_rotate %3 by %c240_i32 dim 1 : vector<4x256xf32>, i32 -> vector<4x256xf32>
    %29 = vector.extract_strided_slice %1 {offsets = [7, 0], sizes = [1, 256], strides = [1, 1]} : vector<9x256xf32> to vector<1x256xf32>
    %30 = vector.broadcast %29 : vector<1x256xf32> to vector<4x256xf32>
    %31 = arith.mulf %28, %30 : vector<4x256xf32>
    %c239_i32 = arith.constant 239 : i32
    %32 = tpu.dynamic_rotate %3 by %c239_i32 dim 1 : vector<4x256xf32>, i32 -> vector<4x256xf32>
    %33 = vector.extract_strided_slice %1 {offsets = [8, 0], sizes = [1, 256], strides = [1, 1]} : vector<9x256xf32> to vector<1x256xf32>
    %34 = vector.broadcast %33 : vector<1x256xf32> to vector<4x256xf32>
    %35 = arith.mulf %32, %34 : vector<4x256xf32>
    %36 = tpu.concatenate %7, %11, %15, %19, %3, %23, %27, %31, %35 in 0 : vector<4x256xf32>, vector<4x256xf32>, vector<4x256xf32>, vector<4x256xf32>, vector<4x256xf32>, vector<4x256xf32>, vector<4x256xf32>, vector<4x256xf32>, vector<4x256xf32> -> vector<36x256xf32>
    %c1 = arith.constant 1 : index
    %c0_6 = arith.constant 0 : index
    %c0_7 = arith.constant 0 : index
    %37 = vector.load %arg1[%c1, %c0_6, %c0_7] : memref<2x4x256xf32, #tpu.memory_space<vmem>>, vector<1x4x256xf32>
    %38 = vector.shape_cast %37 : vector<1x4x256xf32> to vector<4x256xf32>
    %c17_i32_8 = arith.constant 17 : i32
    %39 = tpu.dynamic_rotate %38 by %c17_i32_8 dim 1 : vector<4x256xf32>, i32 -> vector<4x256xf32>
    %40 = vector.extract_strided_slice %1 {offsets = [0, 0], sizes = [1, 256], strides = [1, 1]} : vector<9x256xf32> to vector<1x256xf32>
    %41 = vector.broadcast %40 : vector<1x256xf32> to vector<4x256xf32>
    %42 = arith.mulf %39, %41 : vector<4x256xf32>
    %c16_i32_9 = arith.constant 16 : i32
    %43 = tpu.dynamic_rotate %38 by %c16_i32_9 dim 1 : vector<4x256xf32>, i32 -> vector<4x256xf32>
    %44 = vector.extract_strided_slice %1 {offsets = [1, 0], sizes = [1, 256], strides = [1, 1]} : vector<9x256xf32> to vector<1x256xf32>
    %45 = vector.broadcast %44 : vector<1x256xf32> to vector<4x256xf32>
    %46 = arith.mulf %43, %45 : vector<4x256xf32>
    %c15_i32_10 = arith.constant 15 : i32
    %47 = tpu.dynamic_rotate %38 by %c15_i32_10 dim 1 : vector<4x256xf32>, i32 -> vector<4x256xf32>
    %48 = vector.extract_strided_slice %1 {offsets = [2, 0], sizes = [1, 256], strides = [1, 1]} : vector<9x256xf32> to vector<1x256xf32>
    %49 = vector.broadcast %48 : vector<1x256xf32> to vector<4x256xf32>
    %50 = arith.mulf %47, %49 : vector<4x256xf32>
    %c1_i32_11 = arith.constant 1 : i32
    %51 = tpu.dynamic_rotate %38 by %c1_i32_11 dim 1 : vector<4x256xf32>, i32 -> vector<4x256xf32>
    %52 = vector.extract_strided_slice %1 {offsets = [3, 0], sizes = [1, 256], strides = [1, 1]} : vector<9x256xf32> to vector<1x256xf32>
    %53 = vector.broadcast %52 : vector<1x256xf32> to vector<4x256xf32>
    %54 = arith.mulf %51, %53 : vector<4x256xf32>
    %c255_i32_12 = arith.constant 255 : i32
    %55 = tpu.dynamic_rotate %38 by %c255_i32_12 dim 1 : vector<4x256xf32>, i32 -> vector<4x256xf32>
    %56 = vector.extract_strided_slice %1 {offsets = [5, 0], sizes = [1, 256], strides = [1, 1]} : vector<9x256xf32> to vector<1x256xf32>
    %57 = vector.broadcast %56 : vector<1x256xf32> to vector<4x256xf32>
    %58 = arith.mulf %55, %57 : vector<4x256xf32>
    %c241_i32_13 = arith.constant 241 : i32
    %59 = tpu.dynamic_rotate %38 by %c241_i32_13 dim 1 : vector<4x256xf32>, i32 -> vector<4x256xf32>
    %60 = vector.extract_strided_slice %1 {offsets = [6, 0], sizes = [1, 256], strides = [1, 1]} : vector<9x256xf32> to vector<1x256xf32>
    %61 = vector.broadcast %60 : vector<1x256xf32> to vector<4x256xf32>
    %62 = arith.mulf %59, %61 : vector<4x256xf32>
    %c240_i32_14 = arith.constant 240 : i32
    %63 = tpu.dynamic_rotate %38 by %c240_i32_14 dim 1 : vector<4x256xf32>, i32 -> vector<4x256xf32>
    %64 = vector.extract_strided_slice %1 {offsets = [7, 0], sizes = [1, 256], strides = [1, 1]} : vector<9x256xf32> to vector<1x256xf32>
    %65 = vector.broadcast %64 : vector<1x256xf32> to vector<4x256xf32>
    %66 = arith.mulf %63, %65 : vector<4x256xf32>
    %c239_i32_15 = arith.constant 239 : i32
    %67 = tpu.dynamic_rotate %38 by %c239_i32_15 dim 1 : vector<4x256xf32>, i32 -> vector<4x256xf32>
    %68 = vector.extract_strided_slice %1 {offsets = [8, 0], sizes = [1, 256], strides = [1, 1]} : vector<9x256xf32> to vector<1x256xf32>
    %69 = vector.broadcast %68 : vector<1x256xf32> to vector<4x256xf32>
    %70 = arith.mulf %67, %69 : vector<4x256xf32>
    %71 = tpu.concatenate %42, %46, %50, %54, %38, %58, %62, %66, %70 in 0 : vector<4x256xf32>, vector<4x256xf32>, vector<4x256xf32>, vector<4x256xf32>, vector<4x256xf32>, vector<4x256xf32>, vector<4x256xf32>, vector<4x256xf32>, vector<4x256xf32> -> vector<36x256xf32>
    %72 = tpu.concatenate %36, %71 in 1 : vector<36x256xf32>, vector<36x256xf32> -> vector<36x512xf32>
    %cst = arith.constant dense<0.000000e+00> : vector<8x512xf32>
    %73 = tpu.matmul %0, %72, %cst {dimension_numbers = #tpu.dot_dimension_numbers<[1], [0], [0], [1], [0, 0, 1, 1], [], []>} : vector<8x36xf32>, vector<36x512xf32>, vector<8x512xf32> -> vector<8x512xf32>
    %cst_16 = arith.constant dense<0.000000e+00> : vector<8xf32>
    %74 = vector.multi_reduction <add>, %73, %cst_16 [1] : vector<8x512xf32> to vector<8xf32>
    %75 = vector.shape_cast %74 : vector<8xf32> to vector<8x1xf32>
    %76 = arith.mulf %73, %73 : vector<8x512xf32>
    %cst_17 = arith.constant dense<0.000000e+00> : vector<8xf32>
    %77 = vector.multi_reduction <add>, %76, %cst_17 [1] : vector<8x512xf32> to vector<8xf32>
    %78 = vector.shape_cast %77 : vector<8xf32> to vector<8x1xf32>
    %cst_18 = arith.constant 0.001953125 : f32
    %79 = vector.broadcast %cst_18 : f32 to vector<8x1xf32>
    %80 = arith.mulf %75, %79 : vector<8x1xf32>
    %cst_19 = arith.constant 0.001953125 : f32
    %81 = vector.broadcast %cst_19 : f32 to vector<8x1xf32>
    %82 = arith.mulf %78, %81 : vector<8x1xf32>
    %83 = arith.mulf %80, %80 : vector<8x1xf32>
    %84 = arith.subf %82, %83 : vector<8x1xf32>
    %cst_20 = arith.constant 0.000000e+00 : f32
    %85 = vector.broadcast %cst_20 : f32 to vector<8x1xf32>
    %86 = arith.maximumf %84, %85 : vector<8x1xf32>
    %cst_21 = arith.constant 9.99999974E-6 : f32
    %87 = vector.broadcast %cst_21 : f32 to vector<8x1xf32>
    %88 = arith.addf %86, %87 : vector<8x1xf32>
    %89 = math.rsqrt %88 : vector<8x1xf32>
    %c0_22 = arith.constant 0 : index
    %c0_23 = arith.constant 0 : index
    %90 = vector.load %arg3[%c0_22, %c0_23] : memref<8x1xf32, #tpu.memory_space<vmem>>, vector<8x1xf32>
    %91 = arith.mulf %90, %89 : vector<8x1xf32>
    %c0_24 = arith.constant 0 : index
    %c0_25 = arith.constant 0 : index
    %92 = vector.load %arg4[%c0_24, %c0_25] : memref<8x1xf32, #tpu.memory_space<vmem>>, vector<8x1xf32>
    %93 = arith.mulf %80, %91 : vector<8x1xf32>
    %94 = arith.subf %92, %93 : vector<8x1xf32>
    %95 = vector.broadcast %91 : vector<8x1xf32> to vector<8x512xf32>
    %96 = arith.mulf %73, %95 : vector<8x512xf32>
    %97 = vector.broadcast %94 : vector<8x1xf32> to vector<8x512xf32>
    %98 = arith.addf %96, %97 : vector<8x512xf32>
    %cst_26 = arith.constant 0.000000e+00 : f32
    %99 = vector.broadcast %cst_26 : f32 to vector<8x512xf32>
    %100 = arith.maximumf %98, %99 : vector<8x512xf32>
    %101 = vector.extract_strided_slice %100 {offsets = [0, 0], sizes = [8, 256], strides = [1, 1]} : vector<8x512xf32> to vector<8x256xf32>
    %c0_27 = arith.constant 0 : index
    %c0_28 = arith.constant 0 : index
    %c0_29 = arith.constant 0 : index
    %102 = vector.load %arg6[%c0_27, %c0_28, %c0_29] : memref<2x8x256xf32, #tpu.memory_space<vmem>>, vector<1x8x256xf32>
    %103 = vector.shape_cast %102 : vector<1x8x256xf32> to vector<8x256xf32>
    %104 = vector.shape_cast %101 : vector<8x256xf32> to vector<1x8x256xf32>
    tpu.vector_store %arg6[%c0_27, %c0_28, %c0_29], %104 {strides = array<i32>} : memref<2x8x256xf32, #tpu.memory_space<vmem>>, vector<1x8x256xf32>,
    %105 = vector.extract_strided_slice %100 {offsets = [0, 256], sizes = [8, 256], strides = [1, 1]} : vector<8x512xf32> to vector<8x256xf32>
    %c1_30 = arith.constant 1 : index
    %c0_31 = arith.constant 0 : index
    %c0_32 = arith.constant 0 : index
    %106 = vector.load %arg6[%c1_30, %c0_31, %c0_32] : memref<2x8x256xf32, #tpu.memory_space<vmem>>, vector<1x8x256xf32>
    %107 = vector.shape_cast %106 : vector<1x8x256xf32> to vector<8x256xf32>
    %108 = vector.shape_cast %105 : vector<8x256xf32> to vector<1x8x256xf32>
    tpu.vector_store %arg6[%c1_30, %c0_31, %c0_32], %108 {strides = array<i32>} : memref<2x8x256xf32, #tpu.memory_space<vmem>>, vector<1x8x256xf32>,
    return
  }
  func.func @transform_0(%arg0: i32) -> (i32, i32, i32) {
    %c0_i32 = arith.constant 0 : i32
    %c0_i32_0 = arith.constant 0 : i32
    %c0_i32_1 = arith.constant 0 : i32
    %c0_i32_2 = arith.constant 0 : i32
    return %c0_i32, %c0_i32_0, %c0_i32_1 : i32, i32, i32
  }
  func.func @transform_1(%arg0: i32) -> (i32, i32) {
    %c0_i32 = arith.constant 0 : i32
    %c0_i32_0 = arith.constant 0 : i32
    %c0_i32_1 = arith.constant 0 : i32
    return %c0_i32, %c0_i32_0 : i32, i32
  }
  func.func @transform_2(%arg0: i32) -> (i32, i32) {
    %c0_i32 = arith.constant 0 : i32
    %c0_i32_0 = arith.constant 0 : i32
    %c0_i32_1 = arith.constant 0 : i32
    return %c0_i32, %c0_i32_0 : i32, i32
  }
  func.func @transform_3(%arg0: i32) -> (i32, i32) {
    %c0_i32 = arith.constant 0 : i32
    %c0_i32_0 = arith.constant 0 : i32
    %c0_i32_1 = arith.constant 0 : i32
    return %c0_i32, %c0_i32_0 : i32, i32
  }
  func.func @transform_4(%arg0: i32) -> (i32, i32) {
    %c0_i32 = arith.constant 0 : i32
    %c0_i32_0 = arith.constant 0 : i32
    %c0_i32_1 = arith.constant 0 : i32
    return %c0_i32, %c0_i32_0 : i32, i32
  }
  func.func @transform_5(%arg0: i32) -> (i32, i32, i32) {
    %c0_i32 = arith.constant 0 : i32
    %c0_i32_0 = arith.constant 0 : i32
    %c0_i32_1 = arith.constant 0 : i32
    %c0_i32_2 = arith.constant 0 : i32
    return %c0_i32, %c0_i32_0, %c0_i32_1 : i32, i32, i32
  }
}

</mosaic_0001>

<llo_original>
// kernel: single_conv_relu_batch_forward.1
$region0: #{single_conv_relu_batch_forward.1}
  #allocation0 [shape = 'u32[]', space=smem, size = 0x4, offset = 0x4, fixed_abs, tag = 'smem constant byte address 0x4 - core index']
  #allocation1 [shape = 'u32[72,128]{1,0:T(1,128)}', space=vmem, size = 0x9000, scoped, tag = 'internal scratch']
  %s0 = inlined_call_operand.vmem [shape: f32[2,4,256], index: 0, kind: input, shape index: {}]
  %s1 = inlined_call_operand.vmem [shape: f32[8,36], index: 1, kind: input, shape index: {}]
  %s2 = inlined_call_operand.vmem [shape: f32[8,1], index: 2, kind: input, shape index: {}]
  %s3 = inlined_call_operand.vmem [shape: f32[8,1], index: 3, kind: input, shape index: {}]
  %s4 = inlined_call_operand.vmem [shape: f32[9,256], index: 4, kind: input, shape index: {}]
  %s5 = inlined_call_operand.vmem [shape: f32[2,8,256], index: 5, kind: output, shape index: {}]
  %s6 = sld [smem:[#allocation0]]
  $region30: #{single_conv_relu_batch_forward.1} parent=0
    _
  %s8 = ssub.s32 1, %s6
  %s9 = scalar_select 0, %s8, %s6
  // Predicated region
  $region2: #{single_conv_relu_batch_forward.1} parent=0 // pred_check
    _
  $region3: #{single_conv_relu_batch_forward.1} parent=0 // pred_check_branch
    %11 = sbr.rel (0) target = $region5
  $region4: #{single_conv_relu_batch_forward.1} parent=0 // pred_region
    _
  $region5: #{single_conv_relu_batch_forward.1} parent=0 // pred_fallthru
    _
  // Predicated region
  $region6: #{single_conv_relu_batch_forward.1} parent=0 // pred_check
    _
  $region7: #{single_conv_relu_batch_forward.1} parent=0 // pred_check_branch
    %13 = sbr.rel (0) target = $region9
  $region8: #{single_conv_relu_batch_forward.1} parent=0 // pred_region
    _
  $region9: #{single_conv_relu_batch_forward.1} parent=0 // pred_fallthru
    _
  // Predicated region
  $region10: #{single_conv_relu_batch_forward.1} parent=0 // pred_check
    _
  $region11: #{single_conv_relu_batch_forward.1} parent=0 // pred_check_branch
    %15 = sbr.rel (0) target = $region13
  $region12: #{single_conv_relu_batch_forward.1} parent=0 // pred_region
    _
  $region13: #{single_conv_relu_batch_forward.1} parent=0 // pred_fallthru
    _
  // Predicated region
  $region14: #{single_conv_relu_batch_forward.1} parent=0 // pred_check
    _
  $region15: #{single_conv_relu_batch_forward.1} parent=0 // pred_check_branch
    %17 = sbr.rel (0) target = $region17
  $region16: #{single_conv_relu_batch_forward.1} parent=0 // pred_region
    _
  $region17: #{single_conv_relu_batch_forward.1} parent=0 // pred_fallthru
    _
  // Predicated region
  $region18: #{single_conv_relu_batch_forward.1} parent=0 // pred_check
    _
  $region19: #{single_conv_relu_batch_forward.1} parent=0 // pred_check_branch
    %19 = sbr.rel (0) target = $region21
  $region20: #{single_conv_relu_batch_forward.1} parent=0 // pred_region
    _
  $region21: #{single_conv_relu_batch_forward.1} parent=0 // pred_fallthru
    _
  %v20 = vld [vmem:[%s1] sm:$0xff]
  %v21 = vld [vmem:[%s4] sm:$0xff]
  %v22 = vld [vmem:[%s4 + $0x8] sm:$0xff]
  %v23 = vld [vmem:[%s4 + $0x10] sm:$0x1]
  %v24 = vld [vmem:[%s4 + $0x18] sm:$0x1]
  %v25 = vld [vmem:[%s0] sm:$0xff]
  %27 = vst [vmem:[#allocation1] ss:$2 sm:$0xff] %v25
  %v28 = vld.sshfl [vmem:[#allocation1] sm:$0xff pattern:$0x75316420]
  %v29 = vld.sshfl [vmem:[#allocation1 + $0x8] sm:$0xff pattern:$0x75316420]
  %32 = vrot.lane.b32.xlu0 %v28, 17
  %v33 = vpop.permute.xlu0 %32
  %34 = vrot.lane.b32.xlu0 %v29, 17
  %v35 = vpop.permute.xlu0 %34
  %v36 = vlaneseq
  %v37 = vand.u32 %v36, 127
  %vm38 = vcmp.lt.s32.totalorder %v37, 17
  %v39 = vsel %vm38, %v33, %v35
  %v40 = vsel %vm38, %v35, %v33
  %v41 = vperm.slane %v21, 0
  %v42 = vperm.slane %v22, 0
  %v43 = vmul.f32 %v40, %v41
  %v44 = vmul.f32 %v39, %v42
  %45 = vst [vmem:[#allocation1] ss:$2 sm:$0xff] %v25
  %v46 = vld.sshfl [vmem:[#allocation1] sm:$0xff pattern:$0x75316420]
  %v47 = vld.sshfl [vmem:[#allocation1 + $0x8] sm:$0xff pattern:$0x75316420]
  %50 = vrot.lane.b32.xlu0 %v46, 16
  %v51 = vpop.permute.xlu0 %50
  %52 = vrot.lane.b32.xlu0 %v47, 16
  %v53 = vpop.permute.xlu0 %52
  %vm54 = vcmp.lt.s32.totalorder %v37, 16
  %v55 = vsel %vm54, %v51, %v53
  %v56 = vsel %vm54, %v53, %v51
  %v57 = vperm.slane %v21, 1
  %v58 = vperm.slane %v22, 1
  %v59 = vmul.f32 %v56, %v57
  %v60 = vmul.f32 %v55, %v58
  %61 = vst [vmem:[#allocation1] ss:$2 sm:$0xff] %v25
  %v62 = vld.sshfl [vmem:[#allocation1] sm:$0xff pattern:$0x75316420]
  %v63 = vld.sshfl [vmem:[#allocation1 + $0x8] sm:$0xff pattern:$0x75316420]
  %66 = vrot.lane.b32.xlu0 %v62, 15
  %v67 = vpop.permute.xlu0 %66
  %68 = vrot.lane.b32.xlu0 %v63, 15
  %v69 = vpop.permute.xlu0 %68
  %vm70 = vcmp.lt.s32.totalorder %v37, 15
  %v71 = vsel %vm70, %v67, %v69
  %v72 = vsel %vm70, %v69, %v67
  %v73 = vperm.slane %v21, 2
  %v74 = vperm.slane %v22, 2
  %v75 = vmul.f32 %v72, %v73
  %v76 = vmul.f32 %v71, %v74
  %77 = vst [vmem:[#allocation1] ss:$2 sm:$0xff] %v25
  %v78 = vld.sshfl [vmem:[#allocation1] sm:$0xff pattern:$0x75316420]
  %v79 = vld.sshfl [vmem:[#allocation1 + $0x8] sm:$0xff pattern:$0x75316420]
  %82 = vrot.lane.b32.xlu0 %v78, 1
  %v83 = vpop.permute.xlu0 %82
  %84 = vrot.lane.b32.xlu0 %v79, 1
  %v85 = vpop.permute.xlu0 %84
  %vm86 = vcmp.lt.s32.totalorder %v37, 1
  %v87 = vsel %vm86, %v83, %v85
  %v88 = vsel %vm86, %v85, %v83
  %v89 = vperm.slane %v21, 3
  %v90 = vperm.slane %v22, 3
  %v91 = vmul.f32 %v88, %v89
  %v92 = vmul.f32 %v87, %v90
  %93 = vst [vmem:[#allocation1] ss:$2 sm:$0xff] %v25
  %v94 = vld.sshfl [vmem:[#allocation1] sm:$0xff pattern:$0x75316420]
  %v95 = vld.sshfl [vmem:[#allocation1 + $0x8] sm:$0xff pattern:$0x75316420]
  %98 = vrot.lane.b32.xlu0 %v94, 127
  %v99 = vpop.permute.xlu0 %98
  %100 = vrot.lane.b32.xlu0 %v95, 127
  %v101 = vpop.permute.xlu0 %100
  %vm102 = vcmp.lt.s32.totalorder %v37, 127
  %v103 = vsel %vm102, %v99, %v101
  %v104 = vsel %vm102, %v101, %v99
  %v105 = vperm.slane %v21, 5
  %v106 = vperm.slane %v22, 5
  %v107 = vmul.f32 %v103, %v105
  %v108 = vmul.f32 %v104, %v106
  %109 = vst [vmem:[#allocation1] ss:$2 sm:$0xff] %v25
  %v110 = vld.sshfl [vmem:[#allocation1] sm:$0xff pattern:$0x75316420]
  %v111 = vld.sshfl [vmem:[#allocation1 + $0x8] sm:$0xff pattern:$0x75316420]
  %114 = vrot.lane.b32.xlu0 %v110, 113
  %v115 = vpop.permute.xlu0 %114
  %116 = vrot.lane.b32.xlu0 %v111, 113
  %v117 = vpop.permute.xlu0 %116
  %vm118 = vcmp.lt.s32.totalorder %v37, 113
  %v119 = vsel %vm118, %v115, %v117
  %v120 = vsel %vm118, %v117, %v115
  %v121 = vperm.slane %v21, 6
  %v122 = vperm.slane %v22, 6
  %v123 = vmul.f32 %v119, %v121
  %v124 = vmul.f32 %v120, %v122
  %125 = vst [vmem:[#allocation1] ss:$2 sm:$0xff] %v25
  %v126 = vld.sshfl [vmem:[#allocation1] sm:$0xff pattern:$0x75316420]
  %v127 = vld.sshfl [vmem:[#allocation1 + $0x8] sm:$0xff pattern:$0x75316420]
  %130 = vrot.lane.b32.xlu0 %v126, 112
  %v131 = vpop.permute.xlu0 %130
  %132 = vrot.lane.b32.xlu0 %v127, 112
  %v133 = vpop.permute.xlu0 %132
  %vm134 = vcmp.lt.s32.totalorder %v37, 112
  %v135 = vsel %vm134, %v131, %v133
  %v136 = vsel %vm134, %v133, %v131
  %v137 = vperm.slane %v21, 7
  %v138 = vperm.slane %v22, 7
  %v139 = vmul.f32 %v135, %v137
  %v140 = vmul.f32 %v136, %v138
  %141 = vst [vmem:[#allocation1] ss:$2 sm:$0xff] %v25
  %v142 = vld.sshfl [vmem:[#allocation1] sm:$0xff pattern:$0x75316420]
  %v143 = vld.sshfl [vmem:[#allocation1 + $0x8] sm:$0xff pattern:$0x75316420]
  %146 = vrot.lane.b32.xlu0 %v142, 111
  %v147 = vpop.permute.xlu0 %146
  %148 = vrot.lane.b32.xlu0 %v143, 111
  %v149 = vpop.permute.xlu0 %148
  %vm150 = vcmp.lt.s32.totalorder %v37, 111
  %v151 = vsel %vm150, %v147, %v149
  %v152 = vsel %vm150, %v149, %v147
  %v153 = vperm.slane %v23, 0
  %v154 = vperm.slane %v24, 0
  %v155 = vmul.f32 %v151, %v153
  %v156 = vmul.f32 %v152, %v154
  %v159 = vrot.slane %v59, 4
  %v160 = vrot.slane %v60, 4
  %v165 = vrot.slane %v91, 4
  %v166 = vrot.slane %v92, 4
  %169 = vst [vmem:[#allocation1] ss:$2 sm:$0xff] %v25
  %v170 = vld.sshfl [vmem:[#allocation1] sm:$0xff pattern:$0x75316420]
  %v171 = vld.sshfl [vmem:[#allocation1 + $0x8] sm:$0xff pattern:$0x75316420]
  %v176 = vrot.slane %v107, 4
  %v177 = vrot.slane %v108, 4
  %v182 = vrot.slane %v139, 4
  %v183 = vrot.slane %v140, 4
  %vm186 = vcmask 1043456
  %v187 = vsel %vm186, %v43, %v159
  %v188 = vsel %vm186, %v44, %v160
  %v189 = vsel %vm186, %v75, %v165
  %v190 = vsel %vm186, %v76, %v166
  %v191 = vsel %vm186, %v170, %v176
  %v192 = vsel %vm186, %v171, %v177
  %v193 = vsel %vm186, %v123, %v182
  %v194 = vsel %vm186, %v124, %v183
  %s195 = scalar_lea.vmem %s0, 8
  %v196 = vld [vmem:[%s195] sm:$0xff]
  %198 = vst [vmem:[#allocation1] ss:$2 sm:$0xff] %v196
  %v199 = vld.sshfl [vmem:[#allocation1] sm:$0xff pattern:$0x75316420]
  %v200 = vld.sshfl [vmem:[#allocation1 + $0x8] sm:$0xff pattern:$0x75316420]
  %203 = vrot.lane.b32.xlu0 %v199, 17
  %v204 = vpop.permute.xlu0 %203
  %205 = vrot.lane.b32.xlu0 %v200, 17
  %v206 = vpop.permute.xlu0 %205
  %v207 = vsel %vm38, %v204, %v206
  %v208 = vsel %vm38, %v206, %v204
  %v209 = vmul.f32 %v208, %v41
  %v210 = vmul.f32 %v207, %v42
  %211 = vst [vmem:[#allocation1] ss:$2 sm:$0xff] %v196
  %v212 = vld.sshfl [vmem:[#allocation1] sm:$0xff pattern:$0x75316420]
  %v213 = vld.sshfl [vmem:[#allocation1 + $0x8] sm:$0xff pattern:$0x75316420]
  %216 = vrot.lane.b32.xlu0 %v212, 16
  %v217 = vpop.permute.xlu0 %216
  %218 = vrot.lane.b32.xlu0 %v213, 16
  %v219 = vpop.permute.xlu0 %218
  %v220 = vsel %vm54, %v217, %v219
  %v221 = vsel %vm54, %v219, %v217
  %v222 = vmul.f32 %v221, %v57
  %v223 = vmul.f32 %v220, %v58
  %224 = vst [vmem:[#allocation1] ss:$2 sm:$0xff] %v196
  %v225 = vld.sshfl [vmem:[#allocation1] sm:$0xff pattern:$0x75316420]
  %v226 = vld.sshfl [vmem:[#allocation1 + $0x8] sm:$0xff pattern:$0x75316420]
  %229 = vrot.lane.b32.xlu0 %v225, 15
  %v230 = vpop.permute.xlu0 %229
  %231 = vrot.lane.b32.xlu0 %v226, 15
  %v232 = vpop.permute.xlu0 %231
  %v233 = vsel %vm70, %v230, %v232
  %v234 = vsel %vm70, %v232, %v230
  %v235 = vmul.f32 %v234, %v73
  %v236 = vmul.f32 %v233, %v74
  %237 = vst [vmem:[#allocation1] ss:$2 sm:$0xff] %v196
  %v238 = vld.sshfl [vmem:[#allocation1] sm:$0xff pattern:$0x75316420]
  %v239 = vld.sshfl [vmem:[#allocation1 + $0x8] sm:$0xff pattern:$0x75316420]
  %242 = vrot.lane.b32.xlu0 %v238, 1
  %v243 = vpop.permute.xlu0 %242
  %244 = vrot.lane.b32.xlu0 %v239, 1
  %v245 = vpop.permute.xlu0 %244
  %v246 = vsel %vm86, %v243, %v245
  %v247 = vsel %vm86, %v245, %v243
  %v248 = vmul.f32 %v247, %v89
  %v249 = vmul.f32 %v246, %v90
  %250 = vst [vmem:[#allocation1] ss:$2 sm:$0xff] %v196
  %v251 = vld.sshfl [vmem:[#allocation1] sm:$0xff pattern:$0x75316420]
  %v252 = vld.sshfl [vmem:[#allocation1 + $0x8] sm:$0xff pattern:$0x75316420]
  %255 = vrot.lane.b32.xlu0 %v251, 127
  %v256 = vpop.permute.xlu0 %255
  %257 = vrot.lane.b32.xlu0 %v252, 127
  %v258 = vpop.permute.xlu0 %257
  %v259 = vsel %vm102, %v256, %v258
  %v260 = vsel %vm102, %v258, %v256
  %v261 = vmul.f32 %v259, %v105
  %v262 = vmul.f32 %v260, %v106
  %263 = vst [vmem:[#allocation1] ss:$2 sm:$0xff] %v196
  %v264 = vld.sshfl [vmem:[#allocation1] sm:$0xff pattern:$0x75316420]
  %v265 = vld.sshfl [vmem:[#allocation1 + $0x8] sm:$0xff pattern:$0x75316420]
  %268 = vrot.lane.b32.xlu0 %v264, 113
  %v269 = vpop.permute.xlu0 %268
  %270 = vrot.lane.b32.xlu0 %v265, 113
  %v271 = vpop.permute.xlu0 %270
  %v272 = vsel %vm118, %v269, %v271
  %v273 = vsel %vm118, %v271, %v269
  %v274 = vmul.f32 %v272, %v121
  %v275 = vmul.f32 %v273, %v122
  %276 = vst [vmem:[#allocation1] ss:$2 sm:$0xff] %v196
  %v277 = vld.sshfl [vmem:[#allocation1] sm:$0xff pattern:$0x75316420]
  %v278 = vld.sshfl [vmem:[#allocation1 + $0x8] sm:$0xff pattern:$0x75316420]
  %281 = vrot.lane.b32.xlu0 %v277, 112
  %v282 = vpop.permute.xlu0 %281
  %283 = vrot.lane.b32.xlu0 %v278, 112
  %v284 = vpop.permute.xlu0 %283
  %v285 = vsel %vm134, %v282, %v284
  %v286 = vsel %vm134, %v284, %v282
  %v287 = vmul.f32 %v285, %v137
  %v288 = vmul.f32 %v286, %v138
  %289 = vst [vmem:[#allocation1] ss:$2 sm:$0xff] %v196
  %v290 = vld.sshfl [vmem:[#allocation1] sm:$0xff pattern:$0x75316420]
  %v291 = vld.sshfl [vmem:[#allocation1 + $0x8] sm:$0xff pattern:$0x75316420]
  %294 = vrot.lane.b32.xlu0 %v290, 111
  %v295 = vpop.permute.xlu0 %294
  %296 = vrot.lane.b32.xlu0 %v291, 111
  %v297 = vpop.permute.xlu0 %296
  %v298 = vsel %vm150, %v295, %v297
  %v299 = vsel %vm150, %v297, %v295
  %v300 = vmul.f32 %v298, %v153
  %v301 = vmul.f32 %v299, %v154
  %v304 = vrot.slane %v222, 4
  %v305 = vrot.slane %v223, 4
  %v310 = vrot.slane %v248, 4
  %v311 = vrot.slane %v249, 4
  %314 = vst [vmem:[#allocation1] ss:$2 sm:$0xff] %v196
  %v315 = vld.sshfl [vmem:[#allocation1] sm:$0xff pattern:$0x75316420]
  %v316 = vld.sshfl [vmem:[#allocation1 + $0x8] sm:$0xff pattern:$0x75316420]
  %v321 = vrot.slane %v261, 4
  %v322 = vrot.slane %v262, 4
  %v327 = vrot.slane %v287, 4
  %v328 = vrot.slane %v288, 4
  %v331 = vsel %vm186, %v209, %v304
  %v332 = vsel %vm186, %v210, %v305
  %v333 = vsel %vm186, %v235, %v310
  %v334 = vsel %vm186, %v236, %v311
  %v335 = vsel %vm186, %v315, %v321
  %v336 = vsel %vm186, %v316, %v322
  %v337 = vsel %vm186, %v274, %v327
  %v338 = vsel %vm186, %v275, %v328
  %vm339 = vcmask 293888
  %v341 = vsel %vm339, %v20, 0
  %v344 = vsel %vm186, %v155, 0
  %v347 = vsel %vm186, %v156, 0
  %v350 = vsel %vm186, %v300, 0
  %v353 = vsel %vm186, %v301, 0
  %355 = vmatpush.msra.mxu0 0.0
  %356 = vmatpush.msra.mxu0 0.0
  %357 = vmatpush.msra.mxu0 0.0
  %358 = vmatpush.msra.mxu0 0.0
  %359 = vmatpush.msra.mxu0 0.0
  %360 = vmatpush.msra.mxu0 0.0
  %361 = vmatpush.msra.mxu0 0.0
  %362 = vmatpush.msra.mxu0 0.0
  %363 = vmatpush.msra.mxu0 0.0
  %364 = vmatpush.msra.mxu0 0.0
  %365 = vmatpush.msra.mxu0 0.0
  %366 = vmatpush.msra.mxu0 %v344
  %367 = vmatpush.msra.mxu0 %v193
  %368 = vmatpush.msra.mxu0 %v191
  %369 = vmatpush.msra.mxu0 %v189
  %370 = vmatpush.msra.mxu0 %v187
  %371 = vmatmul.f32.gmra.mxu0 %v341
  %v372 = vpop.f32.mrf.mxu0
  %v373 = vadd.f32 0.0, %v372
  %374 = vdwg.mxu0
  %375 = vmatpush.msra.mxu0 0.0
  %376 = vmatpush.msra.mxu0 0.0
  %377 = vmatpush.msra.mxu0 0.0
  %378 = vmatpush.msra.mxu0 0.0
  %379 = vmatpush.msra.mxu0 0.0
  %380 = vmatpush.msra.mxu0 0.0
  %381 = vmatpush.msra.mxu0 0.0
  %382 = vmatpush.msra.mxu0 0.0
  %383 = vmatpush.msra.mxu0 0.0
  %384 = vmatpush.msra.mxu0 0.0
  %385 = vmatpush.msra.mxu0 0.0
  %386 = vmatpush.msra.mxu0 %v347
  %387 = vmatpush.msra.mxu0 %v194
  %388 = vmatpush.msra.mxu0 %v192
  %389 = vmatpush.msra.mxu0 %v190
  %390 = vmatpush.msra.mxu0 %v188
  %391 = vmatmul.f32.gmra.mxu0 %v341
  %v392 = vpop.f32.mrf.mxu0
  %v393 = vadd.f32 0.0, %v392
  %394 = vdwg.mxu0
  %395 = vmatpush.msra.mxu0 0.0
  %396 = vmatpush.msra.mxu0 0.0
  %397 = vmatpush.msra.mxu0 0.0
  %398 = vmatpush.msra.mxu0 0.0
  %399 = vmatpush.msra.mxu0 0.0
  %400 = vmatpush.msra.mxu0 0.0
  %401 = vmatpush.msra.mxu0 0.0
  %402 = vmatpush.msra.mxu0 0.0
  %403 = vmatpush.msra.mxu0 0.0
  %404 = vmatpush.msra.mxu0 0.0
  %405 = vmatpush.msra.mxu0 0.0
  %406 = vmatpush.msra.mxu0 %v350
  %407 = vmatpush.msra.mxu0 %v337
  %408 = vmatpush.msra.mxu0 %v335
  %409 = vmatpush.msra.mxu0 %v333
  %410 = vmatpush.msra.mxu0 %v331
  %411 = vmatmul.f32.gmra.mxu0 %v341
  %v412 = vpop.f32.mrf.mxu0
  %v413 = vadd.f32 0.0, %v412
  %414 = vdwg.mxu0
  %415 = vmatpush.msra.mxu0 0.0
  %416 = vmatpush.msra.mxu0 0.0
  %417 = vmatpush.msra.mxu0 0.0
  %418 = vmatpush.msra.mxu0 0.0
  %419 = vmatpush.msra.mxu0 0.0
  %420 = vmatpush.msra.mxu0 0.0
  %421 = vmatpush.msra.mxu0 0.0
  %422 = vmatpush.msra.mxu0 0.0
  %423 = vmatpush.msra.mxu0 0.0
  %424 = vmatpush.msra.mxu0 0.0
  %425 = vmatpush.msra.mxu0 0.0
  %426 = vmatpush.msra.mxu0 %v353
  %427 = vmatpush.msra.mxu0 %v338
  %428 = vmatpush.msra.mxu0 %v336
  %429 = vmatpush.msra.mxu0 %v334
  %430 = vmatpush.msra.mxu0 %v332
  %431 = vmatmul.f32.gmra.mxu0 %v341
  %v432 = vpop.f32.mrf.mxu0
  %v433 = vadd.f32 0.0, %v432
  %434 = vdwg.mxu0
  %v435 = vadd.f32 %v373, %v393
  %v436 = vadd.f32 %v435, %v413
  %v437 = vadd.f32 %v436, %v433
  %438 = vadd.xlane.f32.xlu0 %v437
  %v439 = vpop.xlane.xlu0 %438
  %v440 = vmul.f32 %v373, %v373
  %v441 = vmul.f32 %v393, %v393
  %v442 = vmul.f32 %v413, %v413
  %v443 = vmul.f32 %v433, %v433
  %v444 = vadd.f32 %v440, %v441
  %v445 = vadd.f32 %v444, %v442
  %v446 = vadd.f32 %v445, %v443
  %447 = vadd.xlane.f32.xlu0 %v446
  %v448 = vpop.xlane.xlu0 %447
  %v449 = vmul.f32 %v439, 0.001953125
  %v450 = vmul.f32 %v448, 0.001953125
  %v451 = vmul.f32 %v449, %v449
  %v452 = vsub.f32 %v450, %v451
  %v453 = vmax.f32 %v452, 0.0
  %v454 = vadd.f32 %v453, 1e-05
  %v455 = vrsqrt.pop %v454
  %v456 = vmul.f32 %v455, %v454
  %v457 = vmul.f32 %v456, %v455
  %v458 = vmul.f32 0.5, %v457
  %v459 = vsub.f32 1.5, %v458
  %v460 = vmul.f32 %v455, %v459
  %vm461 = vweird.f32 %v454
  %vm462 = vweird.f32 %v455
  %vm463 = vmor %vm461, %vm462
  %v464 = vsel %vm463, %v455, %v460
  %v465 = vld [vmem:[%s2] sm:$0xff]
  %v466 = vmul.f32 %v465, %v464
  %v467 = vld [vmem:[%s3] sm:$0xff]
  %v468 = vmul.f32 %v449, %v466
  %v469 = vsub.f32 %v467, %v468
  %471 = vset.pattern.permute.xlu0 0
  %472 = vperm.xlu0 %471, %v466
  %v473 = vpop.permute.xlu0 %472
  %v475 = vmul.f32 %v373, %v473
  %v476 = vmul.f32 %v393, %v473
  %v477 = vmul.f32 %v413, %v473
  %v478 = vmul.f32 %v433, %v473
  %480 = vset.pattern.permute.xlu0 0
  %481 = vperm.xlu0 %480, %v469
  %v482 = vpop.permute.xlu0 %481
  %v484 = vadd.f32 %v475, %v482
  %v485 = vadd.f32 %v476, %v482
  %v486 = vadd.f32 %v477, %v482
  %v487 = vadd.f32 %v478, %v482
  %v488 = vmax.f32 %v484, 0.0
  %v489 = vmax.f32 %v485, 0.0
  %v490 = vmax.f32 %v486, 0.0
  %v491 = vmax.f32 %v487, 0.0
  %492 = vst [vmem:[%s5] sm:$0xff] %v488
  %493 = vst [vmem:[%s5 + $0x8] sm:$0xff] %v489
  %s494 = scalar_lea.vmem %s5, 16
  %495 = vst [vmem:[%s494] sm:$0xff] %v490
  %496 = vst [vmem:[%s494 + $0x8] sm:$0xff] %v491
  // Predicated region
  $region22: #{single_conv_relu_batch_forward.1} parent=0 // pred_check
    _
  $region23: #{single_conv_relu_batch_forward.1} parent=0 // pred_check_branch
    %498 = sbr.rel (0) target = $region25
  $region24: #{single_conv_relu_batch_forward.1} parent=0 // pred_region
    _
  $region25: #{single_conv_relu_batch_forward.1} parent=0 // pred_fallthru
    _
  // Predicated region
  $region26: #{single_conv_relu_batch_forward.1} parent=0 // pred_check
    _
  $region27: #{single_conv_relu_batch_forward.1} parent=0 // pred_check_branch
    %500 = sbr.rel (0) target = $region29
  $region28: #{single_conv_relu_batch_forward.1} parent=0 // pred_region
    _
  $region29: #{single_conv_relu_batch_forward.1} parent=0 // pred_fallthru
    _

</llo_original>
